<compile_context>
chip_gen: v5e
topology: v5e:2x2
jax: 0.10.0
libtpu: 0.0.40
codegen_flags: <defaults>
</compile_context>

<pallas_src>
from functools import partial

import jax
import jax.numpy as jnp
from jax.experimental import pallas as pl
from jax.experimental.pallas import tpu as pltpu

EPS = 1e-8


def _round_up(n, m):
    return (n + m - 1) // m * m


# --------------------------------------------------------------------------- #
# Pass 1 (the only Pallas pass): MLP per batch tile -> (out_dim, tile) output
# --------------------------------------------------------------------------- #
def _mlp_kernel(x_ref, w1_ref, b1_ref, w2_ref, b2_ref, w3_ref, b3_ref, v_ref,
                *, nr_hidden, act_dtype):
    # Hoist weight / bias loads out of the trace-time-unrolled hidden loop.
    w1 = w1_ref[...]                        # (hidden, input_dim), matmul dtype
    w2 = w2_ref[...]                        # (hidden, hidden),    matmul dtype
    w3 = w3_ref[...]                        # (out_dim, hidden),   matmul dtype
    b1 = b1_ref[...]                        # (hidden, 1), f32
    b2 = b2_ref[...]                        # (hidden, 1), f32 -- broadcasts in the add
    b3 = b3_ref[...]                        # (out_dim, 1), f32
    cdt = w2.dtype                          # matmul input dtype (f32 or bf16)

    x = x_ref[...]                          # (tile, input_dim), natural layout

    # fc1: contract input_dim so the result is (hidden, tile) -> batch on the lane axis.
    v = jax.lax.dot_general(w1, x, (((1,), (1,)), ((), ())),
                            preferred_element_type=jnp.float32)
    v = jnp.tanh((v + b1).astype(act_dtype))

    # nr_hidden x (fc2 + tanh) -- static trip count, unrolled at trace time.
    for _ in range(nr_hidden):
        v = jnp.dot(w2, v.astype(cdt), preferred_element_type=jnp.float32)
        v = jnp.tanh((v + b2).astype(act_dtype))

    # fc3 (+ identity output_nonlin); lane-dense (out_dim, tile) store.
    v_ref[...] = (jnp.dot(w3, v.astype(cdt), preferred_element_type=jnp.float32)
                  + b3).astype(v_ref.dtype)


# --------------------------------------------------------------------------- #
# Wrapper
# --------------------------------------------------------------------------- #
@partial(jax.jit,
         static_argnames=("nr_hidden", "tile_b", "matmul_dtype", "act_dtype"))
def linear_net_forward(x, w1, b1, w2, b2, w3, b3, *,
                       nr_hidden=3, tile_b=2048,
                       matmul_dtype=jnp.float32, act_dtype=jnp.float32):
    """x: [B, input_dim] f32.  w*: [out_features, in_features] (nn.Linear layout),
    b*: [out_features, 1] f32.  Returns [B, output_dim] f32."""
    B, input_dim = x.shape
    out_dim = w3.shape[0]

    # Batch tile: multiple of 128 lanes, at most tile_b rows, at most round_up(B, 128).
    tile = max(128, min(_round_up(tile_b, 128), _round_up(B, 128)))
    b_pad = _round_up(B, tile)
    num_tiles = b_pad // tile

    # Pad the batch dim to a tile multiple (cheap; no transpose of x through HBM).
    xp = x if b_pad == B else jnp.pad(x, ((0, b_pad - B), (0, 0)))
    xp = xp.astype(matmul_dtype)
    w1c, w2c, w3c = (w.astype(matmul_dtype) for w in (w1, w2, w3))

    const = lambda a: pl.BlockSpec(a.shape, lambda i: (0, 0))       # VMEM-resident

    vT = pl.pallas_call(
        partial(_mlp_kernel, nr_hidden=nr_hidden, act_dtype=act_dtype),
        grid=(num_tiles,),
        in_specs=[pl.BlockSpec((tile, input_dim), lambda i: (i, 0)),
                  const(w1c), const(b1), const(w2c), const(b2),
                  const(w3c), const(b3)],
        out_specs=pl.BlockSpec((out_dim, tile), lambda i: (0, i)),
        out_shape=jax.ShapeDtypeStruct((out_dim, b_pad), jnp.float32),
        compiler_params=pltpu.CompilerParams(
            dimension_semantics=("parallel",),          # no cross-tile state -> megacore
            vmem_limit_bytes=48 * 1024 * 1024),
    )(xp, w1c, b1, w2c, b2, w3c, b3)

    # Global per-column min/max + normalization + transpose back: tiny, fused by XLA.
    v = vT[:, :B]                                       # drop padded batch lanes
    vmin = v.min(axis=1, keepdims=True)
    vmax = v.max(axis=1, keepdims=True)
    y = (v - vmin) * (1.0 / (vmax - vmin + EPS))
    return jnp.swapaxes(y, 0, 1)                        # [B, output_dim]


# --------------------------------------------------------------------------- #
# Params / reference
# --------------------------------------------------------------------------- #
def init_params(key, input_dim, hidden_size, output_dim):
    """nn.Linear-style uniform init; weights stored as [out, in], biases as [out, 1]."""
    ks = jax.random.split(key, 6)

    def linear(kw, kb, fan_in, fan_out):
        bound = 1.0 / (fan_in ** 0.5)
        w = jax.random.uniform(kw, (fan_out, fan_in), jnp.float32, -bound, bound)
        b = jax.random.uniform(kb, (fan_out, 1), jnp.float32, -bound, bound)
        return w, b

    w1, b1 = linear(ks[0], ks[1], input_dim, hidden_size)
    w2, b2 = linear(ks[2], ks[3], hidden_size, hidden_size)
    w3, b3 = linear(ks[4], ks[5], hidden_size, output_dim)
    return w1, b1, w2, b2, w3, b3


def _reference_forward(x, params, nr_hidden,
                       matmul_dtype=jnp.float32, act_dtype=jnp.float32):
    """Pure-JAX transcription of linear_net.forward (nonlin=tanh, identity output)."""
    w1, b1, w2, b2, w3, b3 = params
    c = matmul_dtype
    v = jnp.dot(x.astype(c), w1.T.astype(c),
                preferred_element_type=jnp.float32) + b1.T
    v = jnp.tanh(v.astype(act_dtype))
    for _ in range(nr_hidden):
        v = jnp.dot(v.astype(c), w2.T.astype(c),
                    preferred_element_type=jnp.float32) + b2.T
        v = jnp.tanh(v.astype(act_dtype))
    v = jnp.dot(v.astype(c), w3.T.astype(c),
                preferred_element_type=jnp.float32) + b3.T
    vmin = v.min(axis=0, keepdims=True)
    vmax = v.max(axis=0, keepdims=True)
    return (v - vmin) / (vmax - vmin + EPS)


if __name__ == "__main__":
    # Small shapes consistent with the module; hidden=128 keeps MXU tiles full.
    B, INPUT_DIM, HIDDEN, OUTPUT_DIM, NR_HIDDEN = 300, 2, 128, 1, 3

    key = jax.random.PRNGKey(0)
    kx, kp = jax.random.split(key)
    x = jax.random.normal(kx, (B, INPUT_DIM), jnp.float32)
    params = init_params(kp, INPUT_DIM, HIDDEN, OUTPUT_DIM)

    # f32 run; tile_b=128 forces 3 batch tiles (exercises multi-tile + padded last tile).
    out = linear_net_forward(x, *params, nr_hidden=NR_HIDDEN, tile_b=128)
    jax.block_until_ready(out)
    ref = _reference_forward(x, params, NR_HIDDEN)
    assert out.shape == (B, OUTPUT_DIM)
    assert bool(jnp.allclose(out, ref, atol=1e-3, rtol=1e-3))

    # bf16 matmuls (valid on v5e too) + bf16 hidden activations (v6e/v7x EUP saving),
    # default large tile.  Compared against a matching bf16 XLA reference.
    out_bf16 = linear_net_forward(x, *params, nr_hidden=NR_HIDDEN,
                                  matmul_dtype=jnp.bfloat16,
                                  act_dtype=jnp.bfloat16)
    jax.block_until_ready(out_bf16)
    ref_bf16 = _reference_forward(x, params, NR_HIDDEN,
                                  jnp.bfloat16, jnp.bfloat16)
    assert out_bf16.shape == (B, OUTPUT_DIM)
    assert bool(jnp.isfinite(out_bf16).all())
    assert bool(jnp.allclose(out_bf16, ref_bf16, atol=5e-2, rtol=5e-2))

    print("KERNEL_OK")
</pallas_src>

<mosaic_0001>
module attributes {stable_mosaic.version = 11 : i64} {
  func.func @_mlp_kernel(%arg0: i32, %arg1: memref<128x2xf32, #tpu.memory_space<vmem>>, %arg2: memref<128x2xf32, #tpu.memory_space<vmem>>, %arg3: memref<128x1xf32, #tpu.memory_space<vmem>>, %arg4: memref<128x128xf32, #tpu.memory_space<vmem>>, %arg5: memref<128x1xf32, #tpu.memory_space<vmem>>, %arg6: memref<1x128xf32, #tpu.memory_space<vmem>>, %arg7: memref<1x1xf32, #tpu.memory_space<vmem>>, %arg8: memref<1x128xf32, #tpu.memory_space<vmem>>) attributes {dimension_semantics = [#tpu.dimension_semantics<parallel>], iteration_bounds = array<i64: 3>, scalar_prefetch = 0 : i64, scratch_operands = 0 : i64, tpu.core_type = #tpu.core_type<tc>, window_params = [{transform_indices = @transform_0, window_bounds = array<i64: 128, 2>}, {pipeline_mode = #tpu.pipeline_mode<synchronous>, transform_indices = @transform_1, window_bounds = array<i64: 128, 2>}, {pipeline_mode = #tpu.pipeline_mode<synchronous>, transform_indices = @transform_2, window_bounds = array<i64: 128, 1>}, {pipeline_mode = #tpu.pipeline_mode<synchronous>, transform_indices = @transform_3, window_bounds = array<i64: 128, 128>}, {pipeline_mode = #tpu.pipeline_mode<synchronous>, transform_indices = @transform_4, window_bounds = array<i64: 128, 1>}, {pipeline_mode = #tpu.pipeline_mode<synchronous>, transform_indices = @transform_5, window_bounds = array<i64: 1, 128>}, {pipeline_mode = #tpu.pipeline_mode<synchronous>, transform_indices = @transform_6, window_bounds = array<i64: 1, 1>}, {transform_indices = @transform_7, window_bounds = array<i64: 1, 128>}]} {
    %c0 = arith.constant 0 : index
    %c0_0 = arith.constant 0 : index
    %0 = vector.load %arg2[%c0, %c0_0] : memref<128x2xf32, #tpu.memory_space<vmem>>, vector<128x2xf32>
    %c0_1 = arith.constant 0 : index
    %c0_2 = arith.constant 0 : index
    %1 = vector.load %arg4[%c0_1, %c0_2] : memref<128x128xf32, #tpu.memory_space<vmem>>, vector<128x128xf32>
    %c0_3 = arith.constant 0 : index
    %c0_4 = arith.constant 0 : index
    %2 = vector.load %arg6[%c0_3, %c0_4] : memref<1x128xf32, #tpu.memory_space<vmem>>, vector<1x128xf32>
    %c0_5 = arith.constant 0 : index
    %c0_6 = arith.constant 0 : index
    %3 = vector.load %arg3[%c0_5, %c0_6] : memref<128x1xf32, #tpu.memory_space<vmem>>, vector<128x1xf32>
    %c0_7 = arith.constant 0 : index
    %c0_8 = arith.constant 0 : index
    %4 = vector.load %arg5[%c0_7, %c0_8] : memref<128x1xf32, #tpu.memory_space<vmem>>, vector<128x1xf32>
    %c0_9 = arith.constant 0 : index
    %c0_10 = arith.constant 0 : index
    %5 = vector.load %arg7[%c0_9, %c0_10] : memref<1x1xf32, #tpu.memory_space<vmem>>, vector<1x1xf32>
    %c0_11 = arith.constant 0 : index
    %c0_12 = arith.constant 0 : index
    %6 = vector.load %arg1[%c0_11, %c0_12] : memref<128x2xf32, #tpu.memory_space<vmem>>, vector<128x2xf32>
    %cst = arith.constant dense<0.000000e+00> : vector<128x128xf32>
    %7 = tpu.matmul %0, %6, %cst {dimension_numbers = #tpu.dot_dimension_numbers<[1], [1], [0], [0], [0, 0, 1, 0], [], []>} : vector<128x2xf32>, vector<128x2xf32>, vector<128x128xf32> -> vector<128x128xf32>
    %8 = vector.broadcast %3 : vector<128x1xf32> to vector<128x128xf32>
    %9 = arith.addf %7, %8 : vector<128x128xf32>
    %10 = math.tanh %9 : vector<128x128xf32>
    %cst_13 = arith.constant dense<0.000000e+00> : vector<128x128xf32>
    %11 = tpu.matmul %1, %10, %cst_13 {dimension_numbers = #tpu.dot_dimension_numbers<[1], [0], [0], [1], [0, 0, 1, 1], [], []>} : vector<128x128xf32>, vector<128x128xf32>, vector<128x128xf32> -> vector<128x128xf32>
    %12 = vector.broadcast %4 : vector<128x1xf32> to vector<128x128xf32>
    %13 = arith.addf %11, %12 : vector<128x128xf32>
    %14 = math.tanh %13 : vector<128x128xf32>
    %cst_14 = arith.constant dense<0.000000e+00> : vector<128x128xf32>
    %15 = tpu.matmul %1, %14, %cst_14 {dimension_numbers = #tpu.dot_dimension_numbers<[1], [0], [0], [1], [0, 0, 1, 1], [], []>} : vector<128x128xf32>, vector<128x128xf32>, vector<128x128xf32> -> vector<128x128xf32>
    %16 = vector.broadcast %4 : vector<128x1xf32> to vector<128x128xf32>
    %17 = arith.addf %15, %16 : vector<128x128xf32>
    %18 = math.tanh %17 : vector<128x128xf32>
    %cst_15 = arith.constant dense<0.000000e+00> : vector<128x128xf32>
    %19 = tpu.matmul %1, %18, %cst_15 {dimension_numbers = #tpu.dot_dimension_numbers<[1], [0], [0], [1], [0, 0, 1, 1], [], []>} : vector<128x128xf32>, vector<128x128xf32>, vector<128x128xf32> -> vector<128x128xf32>
    %20 = vector.broadcast %4 : vector<128x1xf32> to vector<128x128xf32>
    %21 = arith.addf %19, %20 : vector<128x128xf32>
    %22 = math.tanh %21 : vector<128x128xf32>
    %cst_16 = arith.constant dense<0.000000e+00> : vector<1x128xf32>
    %23 = tpu.matmul %2, %22, %cst_16 {dimension_numbers = #tpu.dot_dimension_numbers<[1], [0], [0], [1], [0, 0, 1, 1], [], []>} : vector<1x128xf32>, vector<128x128xf32>, vector<1x128xf32> -> vector<1x128xf32>
    %24 = vector.broadcast %5 : vector<1x1xf32> to vector<1x128xf32>
    %25 = arith.addf %23, %24 : vector<1x128xf32>
    %c0_17 = arith.constant 0 : index
    %c0_18 = arith.constant 0 : index
    %26 = vector.load %arg8[%c0_17, %c0_18] : memref<1x128xf32, #tpu.memory_space<vmem>>, vector<1x128xf32>
    tpu.vector_store %arg8[%c0_17, %c0_18], %25 {strides = array<i32>} : memref<1x128xf32, #tpu.memory_space<vmem>>, vector<1x128xf32>,
    return
  }
  func.func @transform_0(%arg0: i32) -> (i32, i32) {
    %c0_i32 = arith.constant 0 : i32
    %c0_i32_0 = arith.constant 0 : i32
    return %arg0, %c0_i32 : i32, i32
  }
  func.func @transform_1(%arg0: i32) -> (i32, i32) {
    %c0_i32 = arith.constant 0 : i32
    %c0_i32_0 = arith.constant 0 : i32
    %c0_i32_1 = arith.constant 0 : i32
    return %c0_i32, %c0_i32_0 : i32, i32
  }
  func.func @transform_2(%arg0: i32) -> (i32, i32) {
    %c0_i32 = arith.constant 0 : i32
    %c0_i32_0 = arith.constant 0 : i32
    %c0_i32_1 = arith.constant 0 : i32
    return %c0_i32, %c0_i32_0 : i32, i32
  }
  func.func @transform_3(%arg0: i32) -> (i32, i32) {
    %c0_i32 = arith.constant 0 : i32
    %c0_i32_0 = arith.constant 0 : i32
    %c0_i32_1 = arith.constant 0 : i32
    return %c0_i32, %c0_i32_0 : i32, i32
  }
  func.func @transform_4(%arg0: i32) -> (i32, i32) {
    %c0_i32 = arith.constant 0 : i32
    %c0_i32_0 = arith.constant 0 : i32
    %c0_i32_1 = arith.constant 0 : i32
    return %c0_i32, %c0_i32_0 : i32, i32
  }
  func.func @transform_5(%arg0: i32) -> (i32, i32) {
    %c0_i32 = arith.constant 0 : i32
    %c0_i32_0 = arith.constant 0 : i32
    %c0_i32_1 = arith.constant 0 : i32
    return %c0_i32, %c0_i32_0 : i32, i32
  }
  func.func @transform_6(%arg0: i32) -> (i32, i32) {
    %c0_i32 = arith.constant 0 : i32
    %c0_i32_0 = arith.constant 0 : i32
    %c0_i32_1 = arith.constant 0 : i32
    return %c0_i32, %c0_i32_0 : i32, i32
  }
  func.func @transform_7(%arg0: i32) -> (i32, i32) {
    %c0_i32 = arith.constant 0 : i32
    %c0_i32_0 = arith.constant 0 : i32
    return %c0_i32, %arg0 : i32, i32
  }
}

</mosaic_0001>

<llo_original>
// kernel: linear_net_forward.1
$region0: #{linear_net_forward.1}
  #allocation0 [shape = 'u32[]', space=smem, size = 0x4, offset = 0x4, fixed_abs, tag = 'smem constant byte address 0x4 - core index']
  #allocation1 [shape = 'u32[72,128]{1,0:T(1,128)}', space=vmem, size = 0x9000, scoped, tag = 'internal scratch']
  #allocation2 [shape = 'f32[1,1]{1,0:T(1,128)S(1)}', space=vmem, size = 0x200, scoped, tag = 'scoped memory for linear_net_forward.1']
  %s0 = inlined_call_operand.vmem [shape: f32[384,2], index: 0, kind: input, shape index: {}]
  %s1 = inlined_call_operand.vmem [shape: f32[128,2], index: 1, kind: input, shape index: {}]
  %s2 = inlined_call_operand.vmem [shape: f32[128,1], index: 2, kind: input, shape index: {}]
  %s3 = inlined_call_operand.vmem [shape: f32[128,128], index: 3, kind: input, shape index: {}]
  %s4 = inlined_call_operand.vmem [shape: f32[128,1], index: 4, kind: input, shape index: {}]
  %s5 = inlined_call_operand.vmem [shape: f32[1,128], index: 5, kind: input, shape index: {}]
  %s6 = inlined_call_operand.<no memory space> [shape: f32[1,1], index: 6, kind: input, shape index: {}]
  %s7 = inlined_call_operand.vmem [shape: f32[1,384], index: 7, kind: output, shape index: {}]
  %s8 = sld [smem:[#allocation0]]
  $region61: #{linear_net_forward.1} parent=0
    _
  %s10 = ssub.s32 1, %s8
  %s11 = scalar_select 0, %s10, %s8
  %v12 = vstv %s6
  %13 = vst [vmem:[#allocation2] sm:$0x1] %v12
  loop: start=0, step=1, limit=5
  $region2: #{linear_net_forward.1} parent=0 // loop_pre_header
    _
  $region3: #{linear_net_forward.1} parent=0 // loop_header
    %s15 = sphi 0, %s19
    %p16 = scmp.ge.s32.totalorder %s15, 5
    %s25 = sphi 0, %s27
    %s28 = sphi 0, %s25
    %s29 = sphi 0, %s28
    %s45 = sphi 0, %s29
    %s49 = sphi 0, %s49
    %s51 = sphi 0, %s49
    %s52 = sphi 0, %s51
    %s66 = sphi 0, %s52
    %s70 = sphi 0, %s70
    %s72 = sphi 0, %s70
    %s73 = sphi 0, %s72
    %s87 = sphi 0, %s73
    %s91 = sphi 0, %s91
    %s93 = sphi 0, %s91
    %s94 = sphi 0, %s93
    %s108 = sphi 0, %s94
    %s112 = sphi 0, %s112
    %s114 = sphi 0, %s112
    %s115 = sphi 0, %s114
    %s129 = sphi 0, %s115
    %s133 = sphi 0, %s133
    %s135 = sphi 0, %s133
    %s136 = sphi 0, %s135
    %s150 = sphi 0, %s136
    %s154 = sphi 0, %s154
    %s156 = sphi 0, %s154
    %s157 = sphi 0, %s156
    %s171 = sphi 0, %s157
    %s177 = sphi 0, %s179
    %s180 = sphi 0, %s177
    %s181 = sphi 0, %s180
    %s197 = sphi 0, %s181
  $region4: #{linear_net_forward.1} parent=0 // loop_header_branch
    %18 = sbr.rel (%p16) target = $region8
  $region5: #{linear_net_forward.1} parent=0 // loop_body
    %s20 = ssub.s32 %s15, 1
    %s21 = ssub.s32 %s15, 2
    %s22 = sadd.s32 %s15, 1
    %s23 = ssub.s32 %s15, %s22
    %p24 = scmp.eq.s32.totalorder %s23, 0
    %s26 = sadd.s32 %s25, 1
    %s27 = scalar_select %p24, %s25, %s26
    %p30 = pneg %p24
    %p31 = scmp.eq.s32.totalorder %s15, 2
    %p32 = por %p30, %p31
    %p33 = scmp.ne.s32.totalorder %s25, %s28
    %p34 = scmp.eq.s32.totalorder %s15, 0
    %p35 = por %p33, %p34
    %p36 = scmp.ne.s32.totalorder %s25, %s28
    %p37 = scmp.eq.s32.totalorder %s20, 2
    %p38 = por %p36, %p37
    %p39 = scmp.ne.s32.totalorder %s28, %s29
    %p40 = scmp.eq.s32.totalorder %s20, 0
    %p41 = por %p39, %p40
    %p42 = scmp.ne.s32.totalorder %s28, %s29
    %p43 = scmp.eq.s32.totalorder %s21, 2
    %p44 = por %p42, %p43
    %p46 = scmp.ne.s32.totalorder %s29, %s45
    %p47 = scmp.eq.s32.totalorder %s21, 0
    %p48 = por %p46, %p47
    %s50 = sadd.s32 %s49, 1
    %p53 = scmp.eq.s32.totalorder %s15, 2
    %p54 = scmp.ne.s32.totalorder %s49, %s51
    %p55 = scmp.eq.s32.totalorder %s15, 0
    %p56 = por %p54, %p55
    %p57 = scmp.ne.s32.totalorder %s49, %s51
    %p58 = scmp.eq.s32.totalorder %s20, 2
    %p59 = por %p57, %p58
    %p60 = scmp.ne.s32.totalorder %s51, %s52
    %p61 = scmp.eq.s32.totalorder %s20, 0
    %p62 = por %p60, %p61
    %p63 = scmp.ne.s32.totalorder %s51, %s52
    %p64 = scmp.eq.s32.totalorder %s21, 2
    %p65 = por %p63, %p64
    %p67 = scmp.ne.s32.totalorder %s52, %s66
    %p68 = scmp.eq.s32.totalorder %s21, 0
    %p69 = por %p67, %p68
    %s71 = sadd.s32 %s70, 1
    %p74 = scmp.eq.s32.totalorder %s15, 2
    %p75 = scmp.ne.s32.totalorder %s70, %s72
    %p76 = scmp.eq.s32.totalorder %s15, 0
    %p77 = por %p75, %p76
    %p78 = scmp.ne.s32.totalorder %s70, %s72
    %p79 = scmp.eq.s32.totalorder %s20, 2
    %p80 = por %p78, %p79
    %p81 = scmp.ne.s32.totalorder %s72, %s73
    %p82 = scmp.eq.s32.totalorder %s20, 0
    %p83 = por %p81, %p82
    %p84 = scmp.ne.s32.totalorder %s72, %s73
    %p85 = scmp.eq.s32.totalorder %s21, 2
    %p86 = por %p84, %p85
    %p88 = scmp.ne.s32.totalorder %s73, %s87
    %p89 = scmp.eq.s32.totalorder %s21, 0
    %p90 = por %p88, %p89
    %s92 = sadd.s32 %s91, 1
    %p95 = scmp.eq.s32.totalorder %s15, 2
    %p96 = scmp.ne.s32.totalorder %s91, %s93
    %p97 = scmp.eq.s32.totalorder %s15, 0
    %p98 = por %p96, %p97
    %p99 = scmp.ne.s32.totalorder %s91, %s93
    %p100 = scmp.eq.s32.totalorder %s20, 2
    %p101 = por %p99, %p100
    %p102 = scmp.ne.s32.totalorder %s93, %s94
    %p103 = scmp.eq.s32.totalorder %s20, 0
    %p104 = por %p102, %p103
    %p105 = scmp.ne.s32.totalorder %s93, %s94
    %p106 = scmp.eq.s32.totalorder %s21, 2
    %p107 = por %p105, %p106
    %p109 = scmp.ne.s32.totalorder %s94, %s108
    %p110 = scmp.eq.s32.totalorder %s21, 0
    %p111 = por %p109, %p110
    %s113 = sadd.s32 %s112, 1
    %p116 = scmp.eq.s32.totalorder %s15, 2
    %p117 = scmp.ne.s32.totalorder %s112, %s114
    %p118 = scmp.eq.s32.totalorder %s15, 0
    %p119 = por %p117, %p118
    %p120 = scmp.ne.s32.totalorder %s112, %s114
    %p121 = scmp.eq.s32.totalorder %s20, 2
    %p122 = por %p120, %p121
    %p123 = scmp.ne.s32.totalorder %s114, %s115
    %p124 = scmp.eq.s32.totalorder %s20, 0
    %p125 = por %p123, %p124
    %p126 = scmp.ne.s32.totalorder %s114, %s115
    %p127 = scmp.eq.s32.totalorder %s21, 2
    %p128 = por %p126, %p127
    %p130 = scmp.ne.s32.totalorder %s115, %s129
    %p131 = scmp.eq.s32.totalorder %s21, 0
    %p132 = por %p130, %p131
    %s134 = sadd.s32 %s133, 1
    %p137 = scmp.eq.s32.totalorder %s15, 2
    %p138 = scmp.ne.s32.totalorder %s133, %s135
    %p139 = scmp.eq.s32.totalorder %s15, 0
    %p140 = por %p138, %p139
    %p141 = scmp.ne.s32.totalorder %s133, %s135
    %p142 = scmp.eq.s32.totalorder %s20, 2
    %p143 = por %p141, %p142
    %p144 = scmp.ne.s32.totalorder %s135, %s136
    %p145 = scmp.eq.s32.totalorder %s20, 0
    %p146 = por %p144, %p145
    %p147 = scmp.ne.s32.totalorder %s135, %s136
    %p148 = scmp.eq.s32.totalorder %s21, 2
    %p149 = por %p147, %p148
    %p151 = scmp.ne.s32.totalorder %s136, %s150
    %p152 = scmp.eq.s32.totalorder %s21, 0
    %p153 = por %p151, %p152
    %s155 = sadd.s32 %s154, 1
    %p158 = scmp.eq.s32.totalorder %s15, 2
    %p159 = scmp.ne.s32.totalorder %s154, %s156
    %p160 = scmp.eq.s32.totalorder %s15, 0
    %p161 = por %p159, %p160
    %p162 = scmp.ne.s32.totalorder %s154, %s156
    %p163 = scmp.eq.s32.totalorder %s20, 2
    %p164 = por %p162, %p163
    %p165 = scmp.ne.s32.totalorder %s156, %s157
    %p166 = scmp.eq.s32.totalorder %s20, 0
    %p167 = por %p165, %p166
    %p168 = scmp.ne.s32.totalorder %s156, %s157
    %p169 = scmp.eq.s32.totalorder %s21, 2
    %p170 = por %p168, %p169
    %p172 = scmp.ne.s32.totalorder %s157, %s171
    %p173 = scmp.eq.s32.totalorder %s21, 0
    %p174 = por %p172, %p173
    %s175 = ssub.s32 %s15, %s22
    %p176 = scmp.eq.s32.totalorder %s175, 0
    %s178 = sadd.s32 %s177, 1
    %s179 = scalar_select %p176, %s177, %s178
    %p182 = pneg %p176
    %p183 = scmp.eq.s32.totalorder %s15, 2
    %p184 = por %p182, %p183
    %p185 = scmp.ne.s32.totalorder %s177, %s180
    %p186 = scmp.eq.s32.totalorder %s15, 0
    %p187 = por %p185, %p186
    %p188 = scmp.ne.s32.totalorder %s177, %s180
    %p189 = scmp.eq.s32.totalorder %s20, 2
    %p190 = por %p188, %p189
    %p191 = scmp.ne.s32.totalorder %s180, %s181
    %p192 = scmp.eq.s32.totalorder %s20, 0
    %p193 = por %p191, %p192
    %p194 = scmp.ne.s32.totalorder %s180, %s181
    %p195 = scmp.eq.s32.totalorder %s21, 2
    %p196 = por %p194, %p195
    %p198 = scmp.ne.s32.totalorder %s181, %s197
    %p199 = scmp.eq.s32.totalorder %s21, 0
    %p200 = por %p198, %p199
    %p201 = scmp.le.s32.totalorder 1, %s15
    %p202 = scmp.lt.s32.totalorder %s15, 4
    %p203 = pnand %p201, %p202
    %p204 = pneg %p203
    // Predicated region
    $region9: #{linear_net_forward.1} parent=5 // pred_check
      _
    $region10: #{linear_net_forward.1} parent=5 // pred_check_branch
      %206 = sbr.rel (%p203) target = $region12
    $region11: #{linear_net_forward.1} parent=5 // pred_region
      %s207 = ssub.s32 %s15, 1
      // Predicated region
      $region13: #{linear_net_forward.1} parent=11 // pred_check
        %p208 = pneg %p62
      $region14: #{linear_net_forward.1} parent=11 // pred_check_branch
        %210 = sbr.rel (%p208) target = $region16
      $region15: #{linear_net_forward.1} parent=11 // pred_region
        _
      $region16: #{linear_net_forward.1} parent=11 // pred_fallthru
        _
      // Predicated region
      $region17: #{linear_net_forward.1} parent=11 // pred_check
        %p211 = pneg %p83
      $region18: #{linear_net_forward.1} parent=11 // pred_check_branch
        %213 = sbr.rel (%p211) target = $region20
      $region19: #{linear_net_forward.1} parent=11 // pred_region
        _
      $region20: #{linear_net_forward.1} parent=11 // pred_fallthru
        _
      // Predicated region
      $region21: #{linear_net_forward.1} parent=11 // pred_check
        %p214 = pneg %p104
      $region22: #{linear_net_forward.1} parent=11 // pred_check_branch
        %216 = sbr.rel (%p214) target = $region24
      $region23: #{linear_net_forward.1} parent=11 // pred_region
        _
      $region24: #{linear_net_forward.1} parent=11 // pred_fallthru
        _
      // Predicated region
      $region25: #{linear_net_forward.1} parent=11 // pred_check
        %p217 = pneg %p125
      $region26: #{linear_net_forward.1} parent=11 // pred_check_branch
        %219 = sbr.rel (%p217) target = $region28
      $region27: #{linear_net_forward.1} parent=11 // pred_region
        _
      $region28: #{linear_net_forward.1} parent=11 // pred_fallthru
        _
      // Predicated region
      $region29: #{linear_net_forward.1} parent=11 // pred_check
        %p220 = pneg %p146
      $region30: #{linear_net_forward.1} parent=11 // pred_check_branch
        %222 = sbr.rel (%p220) target = $region32
      $region31: #{linear_net_forward.1} parent=11 // pred_region
        _
      $region32: #{linear_net_forward.1} parent=11 // pred_fallthru
        _
      // Predicated region
      $region33: #{linear_net_forward.1} parent=11 // pred_check
        %p223 = pneg %p167
      $region34: #{linear_net_forward.1} parent=11 // pred_check_branch
        %225 = sbr.rel (%p223) target = $region36
      $region35: #{linear_net_forward.1} parent=11 // pred_region
        _
      $region36: #{linear_net_forward.1} parent=11 // pred_fallthru
        _
    $region12: #{linear_net_forward.1} parent=5 // pred_fallthru
      _
    %p226 = scmp.lt.s32.totalorder %s15, 3
    // Predicated region
    $region37: #{linear_net_forward.1} parent=5 // pred_check
      %p227 = pneg %p226
    $region38: #{linear_net_forward.1} parent=5 // pred_check_branch
      %229 = sbr.rel (%p227) target = $region40
    $region39: #{linear_net_forward.1} parent=5 // pred_region
      // Predicated region
      $region41: #{linear_net_forward.1} parent=39 // pred_check
        %p230 = pneg %p35
      $region42: #{linear_net_forward.1} parent=39 // pred_check_branch
        %232 = sbr.rel (%p230) target = $region44
      $region43: #{linear_net_forward.1} parent=39 // pred_region
        %s233 = smul.u32 16, %s15
        %p234 = scmp.lt.s32.totalorder %s233, 47
        %s235 = scalar_select %p234, %s233, 47
        %s236 = smul.addr %s235, 8
        %s237 = scalar_lea.vmem %s0, %s236
        %s238 = smul.u32 16, %s15
      $region44: #{linear_net_forward.1} parent=39 // pred_fallthru
        _
    $region40: #{linear_net_forward.1} parent=5 // pred_fallthru
      _
    %p239 = scmp.le.s32.totalorder 1, %s15
    %p240 = scmp.lt.s32.totalorder %s15, 4
    %p241 = pnand %p239, %p240
    %p242 = pneg %p241
    // Predicated region
    $region45: #{linear_net_forward.1} parent=5 // pred_check
      _
    $region46: #{linear_net_forward.1} parent=5 // pred_check_branch
      %244 = sbr.rel (%p241) target = $region48
    $region47: #{linear_net_forward.1} parent=5 // pred_region
      %s245 = ssub.s32 %s15, 1
      %s246 = smul.u32 16, %s20
      %p247 = scmp.lt.s32.totalorder %s246, 47
      %s248 = scalar_select %p247, %s246, 47
      %s249 = smul.addr %s248, 8
      %s250 = scalar_lea.vmem %s0, %s249
      %p251 = pneg %p41
      %p252 = pneg %p38
      %p253 = pneg %p62
      %p254 = pneg %p59
      %p255 = pneg %p83
      %p256 = pneg %p80
      %p257 = pneg %p104
      %p258 = pneg %p101
      %p259 = pneg %p125
      %p260 = pneg %p122
      %p261 = pneg %p146
      %p262 = pneg %p143
      %p263 = pneg %p167
      %p264 = pneg %p164
      %p265 = pneg %p193
      %p266 = pneg %p190
      %p267 = scmp.lt.s32.totalorder %s20, 2
      %s268 = scalar_select %p267, %s20, 2
      %s269 = scalar_lea.vmem %s7, %s268
      %s270 = smul.u32 16, %s20
      %p271 = scmp.lt.s32.totalorder %s270, 47
      %s272 = scalar_select %p271, %s270, 47
      %s273 = smul.addr %s272, 8
      %s274 = scalar_lea.vmem %s0, %s273
      %s275 = smul.u32 16, %s20
      %p276 = scmp.lt.s32.totalorder %s20, 2
      %s277 = scalar_select %p276, %s20, 2
      %s278 = scalar_lea.vmem %s7, %s277
      %v279 = vld [vmem:[%s1] sm:$0xff]
      %v280 = vld [vmem:[%s1 + $0x8] sm:$0xff]
      %v281 = vld [vmem:[%s1 + $0x10] sm:$0xff]
      %v282 = vld [vmem:[%s1 + $0x18] sm:$0xff]
      %v283 = vld [vmem:[%s1 + $0x20] sm:$0xff]
      %v284 = vld [vmem:[%s1 + $0x28] sm:$0xff]
      %v285 = vld [vmem:[%s1 + $0x30] sm:$0xff]
      %v286 = vld [vmem:[%s1 + $0x38] sm:$0xff]
      %v287 = vld [vmem:[%s1 + $0x40] sm:$0xff]
      %v288 = vld [vmem:[%s1 + $0x48] sm:$0xff]
      %v289 = vld [vmem:[%s1 + $0x50] sm:$0xff]
      %v290 = vld [vmem:[%s1 + $0x58] sm:$0xff]
      %v291 = vld [vmem:[%s1 + $0x60] sm:$0xff]
      %v292 = vld [vmem:[%s1 + $0x68] sm:$0xff]
      %v293 = vld [vmem:[%s1 + $0x70] sm:$0xff]
      %v294 = vld [vmem:[%s1 + $0x78] sm:$0xff]
      %v295 = vld [vmem:[%s3] sm:$0xff]
      %v296 = vld [vmem:[%s3 + $0x8] sm:$0xff]
      %v297 = vld [vmem:[%s3 + $0x10] sm:$0xff]
      %v298 = vld [vmem:[%s3 + $0x18] sm:$0xff]
      %v299 = vld [vmem:[%s3 + $0x20] sm:$0xff]
      %v300 = vld [vmem:[%s3 + $0x28] sm:$0xff]
      %v301 = vld [vmem:[%s3 + $0x30] sm:$0xff]
      %v302 = vld [vmem:[%s3 + $0x38] sm:$0xff]
      %v303 = vld [vmem:[%s3 + $0x40] sm:$0xff]
      %v304 = vld [vmem:[%s3 + $0x48] sm:$0xff]
      %v305 = vld [vmem:[%s3 + $0x50] sm:$0xff]
      %v306 = vld [vmem:[%s3 + $0x58] sm:$0xff]
      %v307 = vld [vmem:[%s3 + $0x60] sm:$0xff]
      %v308 = vld [vmem:[%s3 + $0x68] sm:$0xff]
      %v309 = vld [vmem:[%s3 + $0x70] sm:$0xff]
      %v310 = vld [vmem:[%s3 + $0x78] sm:$0xff]
      %v311 = vld [vmem:[%s5] sm:$0x1]
      %v312 = vld [vmem:[%s2] sm:$0xff]
      %v313 = vld [vmem:[%s2 + $0x8] sm:$0xff]
      %v314 = vld [vmem:[%s2 + $0x10] sm:$0xff]
      %v315 = vld [vmem:[%s2 + $0x18] sm:$0xff]
      %v316 = vld [vmem:[%s2 + $0x20] sm:$0xff]
      %v317 = vld [vmem:[%s2 + $0x28] sm:$0xff]
      %v318 = vld [vmem:[%s2 + $0x30] sm:$0xff]
      %v319 = vld [vmem:[%s2 + $0x38] sm:$0xff]
      %v320 = vld [vmem:[%s2 + $0x40] sm:$0xff]
      %v321 = vld [vmem:[%s2 + $0x48] sm:$0xff]
      %v322 = vld [vmem:[%s2 + $0x50] sm:$0xff]
      %v323 = vld [vmem:[%s2 + $0x58] sm:$0xff]
      %v324 = vld [vmem:[%s2 + $0x60] sm:$0xff]
      %v325 = vld [vmem:[%s2 + $0x68] sm:$0xff]
      %v326 = vld [vmem:[%s2 + $0x70] sm:$0xff]
      %v327 = vld [vmem:[%s2 + $0x78] sm:$0xff]
      %v328 = vld [vmem:[%s4] sm:$0xff]
      %v329 = vld [vmem:[%s4 + $0x8] sm:$0xff]
      %v330 = vld [vmem:[%s4 + $0x10] sm:$0xff]
      %v331 = vld [vmem:[%s4 + $0x18] sm:$0xff]
      %v332 = vld [vmem:[%s4 + $0x20] sm:$0xff]
      %v333 = vld [vmem:[%s4 + $0x28] sm:$0xff]
      %v334 = vld [vmem:[%s4 + $0x30] sm:$0xff]
      %v335 = vld [vmem:[%s4 + $0x38] sm:$0xff]
      %v336 = vld [vmem:[%s4 + $0x40] sm:$0xff]
      %v337 = vld [vmem:[%s4 + $0x48] sm:$0xff]
      %v338 = vld [vmem:[%s4 + $0x50] sm:$0xff]
      %v339 = vld [vmem:[%s4 + $0x58] sm:$0xff]
      %v340 = vld [vmem:[%s4 + $0x60] sm:$0xff]
      %v341 = vld [vmem:[%s4 + $0x68] sm:$0xff]
      %v342 = vld [vmem:[%s4 + $0x70] sm:$0xff]
      %v343 = vld [vmem:[%s4 + $0x78] sm:$0xff]
      %v344 = vld [vmem:[#allocation2] sm:$0x1]
      %v345 = vld [vmem:[%s274] sm:$0xff]
      %v346 = vld [vmem:[%s274 + $0x8] sm:$0xff]
      %v347 = vld [vmem:[%s274 + $0x10] sm:$0xff]
      %v348 = vld [vmem:[%s274 + $0x18] sm:$0xff]
      %v349 = vld [vmem:[%s274 + $0x20] sm:$0xff]
      %v350 = vld [vmem:[%s274 + $0x28] sm:$0xff]
      %v351 = vld [vmem:[%s274 + $0x30] sm:$0xff]
      %v352 = vld [vmem:[%s274 + $0x38] sm:$0xff]
      %v353 = vld [vmem:[%s274 + $0x40] sm:$0xff]
      %v354 = vld [vmem:[%s274 + $0x48] sm:$0xff]
      %v355 = vld [vmem:[%s274 + $0x50] sm:$0xff]
      %v356 = vld [vmem:[%s274 + $0x58] sm:$0xff]
      %v357 = vld [vmem:[%s274 + $0x60] sm:$0xff]
      %v358 = vld [vmem:[%s274 + $0x68] sm:$0xff]
      %v359 = vld [vmem:[%s274 + $0x70] sm:$0xff]
      %v360 = vld [vmem:[%s274 + $0x78] sm:$0xff]
      %362 = vset.pattern.permute.xlu0 0
      %363 = vperm.xlu0 %362, %v312
      %v364 = vpop.permute.xlu0 %363
      %367 = vset.pattern.permute.xlu0 0
      %368 = vperm.xlu0 %367, %v313
      %v369 = vpop.permute.xlu0 %368
      %372 = vset.pattern.permute.xlu0 0
      %373 = vperm.xlu0 %372, %v314
      %v374 = vpop.permute.xlu0 %373
      %377 = vset.pattern.permute.xlu0 0
      %378 = vperm.xlu0 %377, %v315
      %v379 = vpop.permute.xlu0 %378
      %382 = vset.pattern.permute.xlu0 0
      %383 = vperm.xlu0 %382, %v316
      %v384 = vpop.permute.xlu0 %383
      %387 = vset.pattern.permute.xlu0 0
      %388 = vperm.xlu0 %387, %v317
      %v389 = vpop.permute.xlu0 %388
      %392 = vset.pattern.permute.xlu0 0
      %393 = vperm.xlu0 %392, %v318
      %v394 = vpop.permute.xlu0 %393
      %397 = vset.pattern.permute.xlu0 0
      %398 = vperm.xlu0 %397, %v319
      %v399 = vpop.permute.xlu0 %398
      %402 = vset.pattern.permute.xlu0 0
      %403 = vperm.xlu0 %402, %v320
      %v404 = vpop.permute.xlu0 %403
      %407 = vset.pattern.permute.xlu0 0
      %408 = vperm.xlu0 %407, %v321
      %v409 = vpop.permute.xlu0 %408
      %412 = vset.pattern.permute.xlu0 0
      %413 = vperm.xlu0 %412, %v322
      %v414 = vpop.permute.xlu0 %413
      %417 = vset.pattern.permute.xlu0 0
      %418 = vperm.xlu0 %417, %v323
      %v419 = vpop.permute.xlu0 %418
      %422 = vset.pattern.permute.xlu0 0
      %423 = vperm.xlu0 %422, %v324
      %v424 = vpop.permute.xlu0 %423
      %427 = vset.pattern.permute.xlu0 0
      %428 = vperm.xlu0 %427, %v325
      %v429 = vpop.permute.xlu0 %428
      %432 = vset.pattern.permute.xlu0 0
      %433 = vperm.xlu0 %432, %v326
      %v434 = vpop.permute.xlu0 %433
      %437 = vset.pattern.permute.xlu0 0
      %438 = vperm.xlu0 %437, %v327
      %v439 = vpop.permute.xlu0 %438
      %vm441 = vcmask 15360
      %v443 = vsel %vm441, %v279, 0
      %v446 = vsel %vm441, %v280, 0
      %v449 = vsel %vm441, %v281, 0
      %v452 = vsel %vm441, %v282, 0
      %v455 = vsel %vm441, %v283, 0
      %v458 = vsel %vm441, %v284, 0
      %v461 = vsel %vm441, %v285, 0
      %v464 = vsel %vm441, %v286, 0
      %v467 = vsel %vm441, %v287, 0
      %v470 = vsel %vm441, %v288, 0
      %v473 = vsel %vm441, %v289, 0
      %v476 = vsel %vm441, %v290, 0
      %v479 = vsel %vm441, %v291, 0
      %v482 = vsel %vm441, %v292, 0
      %v485 = vsel %vm441, %v293, 0
      %v488 = vsel %vm441, %v294, 0
      %v491 = vsel %vm441, %v345, 0
      %v494 = vsel %vm441, %v346, 0
      %v497 = vsel %vm441, %v347, 0
      %v500 = vsel %vm441, %v348, 0
      %v503 = vsel %vm441, %v349, 0
      %v506 = vsel %vm441, %v350, 0
      %v509 = vsel %vm441, %v351, 0
      %v512 = vsel %vm441, %v352, 0
      %v515 = vsel %vm441, %v353, 0
      %v518 = vsel %vm441, %v354, 0
      %v521 = vsel %vm441, %v355, 0
      %v524 = vsel %vm441, %v356, 0
      %v527 = vsel %vm441, %v357, 0
      %v530 = vsel %vm441, %v358, 0
      %v533 = vsel %vm441, %v359, 0
      %v536 = vsel %vm441, %v360, 0
      %538 = vmatpush.xpose.msra.mxu0 %v536
      %539 = vmatpush.xpose.msra.mxu0 %v533
      %540 = vmatpush.xpose.msra.mxu0 %v530
      %541 = vmatpush.xpose.msra.mxu0 %v527
      %542 = vmatpush.xpose.msra.mxu0 %v524
      %543 = vmatpush.xpose.msra.mxu0 %v521
      %544 = vmatpush.xpose.msra.mxu0 %v518
      %545 = vmatpush.xpose.msra.mxu0 %v515
      %546 = vmatpush.xpose.msra.mxu0 %v512
      %547 = vmatpush.xpose.msra.mxu0 %v509
      %548 = vmatpush.xpose.msra.mxu0 %v506
      %549 = vmatpush.xpose.msra.mxu0 %v503
      %550 = vmatpush.xpose.msra.mxu0 %v500
      %551 = vmatpush.xpose.msra.mxu0 %v497
      %552 = vmatpush.xpose.msra.mxu0 %v494
      %553 = vmatpush.xpose.msra.mxu0 %v491
      %554 = vmatmul.f32.gmra.mxu0 %v443
      %v555 = vpop.f32.mrf.mxu0
      %v556 = vadd.f32 %v364, %v555
      %557 = vmatmul.f32.gmra.mxu0 %v446
      %v558 = vpop.f32.mrf.mxu0
      %v559 = vadd.f32 %v369, %v558
      %560 = vmatmul.f32.gmra.mxu0 %v449
      %v561 = vpop.f32.mrf.mxu0
      %v562 = vadd.f32 %v374, %v561
      %563 = vmatmul.f32.gmra.mxu0 %v452
      %v564 = vpop.f32.mrf.mxu0
      %v565 = vadd.f32 %v379, %v564
      %566 = vmatmul.f32.gmra.mxu0 %v455
      %v567 = vpop.f32.mrf.mxu0
      %v568 = vadd.f32 %v384, %v567
      %569 = vmatmul.f32.gmra.mxu0 %v458
      %v570 = vpop.f32.mrf.mxu0
      %v571 = vadd.f32 %v389, %v570
      %572 = vmatmul.f32.gmra.mxu0 %v461
      %v573 = vpop.f32.mrf.mxu0
      %v574 = vadd.f32 %v394, %v573
      %575 = vmatmul.f32.gmra.mxu0 %v464
      %v576 = vpop.f32.mrf.mxu0
      %v577 = vadd.f32 %v399, %v576
      %578 = vmatmul.f32.gmra.mxu0 %v467
      %v579 = vpop.f32.mrf.mxu0
      %v580 = vadd.f32 %v404, %v579
      %581 = vmatmul.f32.gmra.mxu0 %v470
      %v582 = vpop.f32.mrf.mxu0
      %v583 = vadd.f32 %v409, %v582
      %584 = vmatmul.f32.gmra.mxu0 %v473
      %v585 = vpop.f32.mrf.mxu0
      %v586 = vadd.f32 %v414, %v585
      %587 = vmatmul.f32.gmra.mxu0 %v476
      %v588 = vpop.f32.mrf.mxu0
      %v589 = vadd.f32 %v419, %v588
      %590 = vmatmul.f32.gmra.mxu0 %v479
      %v591 = vpop.f32.mrf.mxu0
      %v592 = vadd.f32 %v424, %v591
      %593 = vmatmul.f32.gmra.mxu0 %v482
      %v594 = vpop.f32.mrf.mxu0
      %v595 = vadd.f32 %v429, %v594
      %596 = vmatmul.f32.gmra.mxu0 %v485
      %v597 = vpop.f32.mrf.mxu0
      %v598 = vadd.f32 %v434, %v597
      %599 = vmatmul.f32.gmra.mxu0 %v488
      %v600 = vpop.f32.mrf.mxu0
      %v601 = vadd.f32 %v439, %v600
      %602 = vdwg.mxu0
      %v603 = vtanh.pop %v556
      %v604 = vtanh.pop %v559
      %v605 = vtanh.pop %v562
      %v606 = vtanh.pop %v565
      %v607 = vtanh.pop %v568
      %v608 = vtanh.pop %v571
      %v609 = vtanh.pop %v574
      %v610 = vtanh.pop %v577
      %v611 = vtanh.pop %v580
      %v612 = vtanh.pop %v583
      %v613 = vtanh.pop %v586
      %v614 = vtanh.pop %v589
      %v615 = vtanh.pop %v592
      %v616 = vtanh.pop %v595
      %v617 = vtanh.pop %v598
      %v618 = vtanh.pop %v601
      %620 = vset.pattern.permute.xlu0 0
      %621 = vperm.xlu0 %620, %v328
      %v622 = vpop.permute.xlu0 %621
      %625 = vset.pattern.permute.xlu0 0
      %626 = vperm.xlu0 %625, %v329
      %v627 = vpop.permute.xlu0 %626
      %630 = vset.pattern.permute.xlu0 0
      %631 = vperm.xlu0 %630, %v330
      %v632 = vpop.permute.xlu0 %631
      %635 = vset.pattern.permute.xlu0 0
      %636 = vperm.xlu0 %635, %v331
      %v637 = vpop.permute.xlu0 %636
      %640 = vset.pattern.permute.xlu0 0
      %641 = vperm.xlu0 %640, %v332
      %v642 = vpop.permute.xlu0 %641
      %645 = vset.pattern.permute.xlu0 0
      %646 = vperm.xlu0 %645, %v333
      %v647 = vpop.permute.xlu0 %646
      %650 = vset.pattern.permute.xlu0 0
      %651 = vperm.xlu0 %650, %v334
      %v652 = vpop.permute.xlu0 %651
      %655 = vset.pattern.permute.xlu0 0
      %656 = vperm.xlu0 %655, %v335
      %v657 = vpop.permute.xlu0 %656
      %660 = vset.pattern.permute.xlu0 0
      %661 = vperm.xlu0 %660, %v336
      %v662 = vpop.permute.xlu0 %661
      %665 = vset.pattern.permute.xlu0 0
      %666 = vperm.xlu0 %665, %v337
      %v667 = vpop.permute.xlu0 %666
      %670 = vset.pattern.permute.xlu0 0
      %671 = vperm.xlu0 %670, %v338
      %v672 = vpop.permute.xlu0 %671
      %675 = vset.pattern.permute.xlu0 0
      %676 = vperm.xlu0 %675, %v339
      %v677 = vpop.permute.xlu0 %676
      %680 = vset.pattern.permute.xlu0 0
      %681 = vperm.xlu0 %680, %v340
      %v682 = vpop.permute.xlu0 %681
      %685 = vset.pattern.permute.xlu0 0
      %686 = vperm.xlu0 %685, %v341
      %v687 = vpop.permute.xlu0 %686
      %690 = vset.pattern.permute.xlu0 0
      %691 = vperm.xlu0 %690, %v342
      %v692 = vpop.permute.xlu0 %691
      %695 = vset.pattern.permute.xlu0 0
      %696 = vperm.xlu0 %695, %v343
      %v697 = vpop.permute.xlu0 %696
      %699 = vmatpush.msra.mxu0 %v618
      %700 = vmatpush.msra.mxu0 %v617
      %701 = vmatpush.msra.mxu0 %v616
      %702 = vmatpush.msra.mxu0 %v615
      %703 = vmatpush.msra.mxu0 %v614
      %704 = vmatpush.msra.mxu0 %v613
      %705 = vmatpush.msra.mxu0 %v612
      %706 = vmatpush.msra.mxu0 %v611
      %707 = vmatpush.msra.mxu0 %v610
      %708 = vmatpush.msra.mxu0 %v609
      %709 = vmatpush.msra.mxu0 %v608
      %710 = vmatpush.msra.mxu0 %v607
      %711 = vmatpush.msra.mxu0 %v606
      %712 = vmatpush.msra.mxu0 %v605
      %713 = vmatpush.msra.mxu0 %v604
      %714 = vmatpush.msra.mxu0 %v603
      %715 = vmatmul.f32.gmra.mxu0 %v295
      %v716 = vpop.f32.mrf.mxu0
      %v717 = vadd.f32 %v622, %v716
      %718 = vmatmul.f32.gmra.mxu0 %v296
      %v719 = vpop.f32.mrf.mxu0
      %v720 = vadd.f32 %v627, %v719
      %721 = vmatmul.f32.gmra.mxu0 %v297
      %v722 = vpop.f32.mrf.mxu0
      %v723 = vadd.f32 %v632, %v722
      %724 = vmatmul.f32.gmra.mxu0 %v298
      %v725 = vpop.f32.mrf.mxu0
      %v726 = vadd.f32 %v637, %v725
      %727 = vmatmul.f32.gmra.mxu0 %v299
      %v728 = vpop.f32.mrf.mxu0
      %v729 = vadd.f32 %v642, %v728
      %730 = vmatmul.f32.gmra.mxu0 %v300
      %v731 = vpop.f32.mrf.mxu0
      %v732 = vadd.f32 %v647, %v731
      %733 = vmatmul.f32.gmra.mxu0 %v301
      %v734 = vpop.f32.mrf.mxu0
      %v735 = vadd.f32 %v652, %v734
      %736 = vmatmul.f32.gmra.mxu0 %v302
      %v737 = vpop.f32.mrf.mxu0
      %v738 = vadd.f32 %v657, %v737
      %739 = vmatmul.f32.gmra.mxu0 %v303
      %v740 = vpop.f32.mrf.mxu0
      %v741 = vadd.f32 %v662, %v740
      %742 = vmatmul.f32.gmra.mxu0 %v304
      %v743 = vpop.f32.mrf.mxu0
      %v744 = vadd.f32 %v667, %v743
      %745 = vmatmul.f32.gmra.mxu0 %v305
      %v746 = vpop.f32.mrf.mxu0
      %v747 = vadd.f32 %v672, %v746
      %748 = vmatmul.f32.gmra.mxu0 %v306
      %v749 = vpop.f32.mrf.mxu0
      %v750 = vadd.f32 %v677, %v749
      %751 = vmatmul.f32.gmra.mxu0 %v307
      %v752 = vpop.f32.mrf.mxu0
      %v753 = vadd.f32 %v682, %v752
      %754 = vmatmul.f32.gmra.mxu0 %v308
      %v755 = vpop.f32.mrf.mxu0
      %v756 = vadd.f32 %v687, %v755
      %757 = vmatmul.f32.gmra.mxu0 %v309
      %v758 = vpop.f32.mrf.mxu0
      %v759 = vadd.f32 %v692, %v758
      %760 = vmatmul.f32.gmra.mxu0 %v310
      %v761 = vpop.f32.mrf.mxu0
      %v762 = vadd.f32 %v697, %v761
      %763 = vdwg.mxu0
      %v764 = vtanh.pop %v717
      %v765 = vtanh.pop %v720
      %v766 = vtanh.pop %v723
      %v767 = vtanh.pop %v726
      %v768 = vtanh.pop %v729
      %v769 = vtanh.pop %v732
      %v770 = vtanh.pop %v735
      %v771 = vtanh.pop %v738
      %v772 = vtanh.pop %v741
      %v773 = vtanh.pop %v744
      %v774 = vtanh.pop %v747
      %v775 = vtanh.pop %v750
      %v776 = vtanh.pop %v753
      %v777 = vtanh.pop %v756
      %v778 = vtanh.pop %v759
      %v779 = vtanh.pop %v762
      %780 = vmatpush.msra.mxu0 %v779
      %781 = vmatpush.msra.mxu0 %v778
      %782 = vmatpush.msra.mxu0 %v777
      %783 = vmatpush.msra.mxu0 %v776
      %784 = vmatpush.msra.mxu0 %v775
      %785 = vmatpush.msra.mxu0 %v774
      %786 = vmatpush.msra.mxu0 %v773
      %787 = vmatpush.msra.mxu0 %v772
      %788 = vmatpush.msra.mxu0 %v771
      %789 = vmatpush.msra.mxu0 %v770
      %790 = vmatpush.msra.mxu0 %v769
      %791 = vmatpush.msra.mxu0 %v768
      %792 = vmatpush.msra.mxu0 %v767
      %793 = vmatpush.msra.mxu0 %v766
      %794 = vmatpush.msra.mxu0 %v765
      %795 = vmatpush.msra.mxu0 %v764
      %796 = vmatmul.f32.gmra.mxu0 %v295
      %v797 = vpop.f32.mrf.mxu0
      %v798 = vadd.f32 %v622, %v797
      %799 = vmatmul.f32.gmra.mxu0 %v296
      %v800 = vpop.f32.mrf.mxu0
      %v801 = vadd.f32 %v627, %v800
      %802 = vmatmul.f32.gmra.mxu0 %v297
      %v803 = vpop.f32.mrf.mxu0
      %v804 = vadd.f32 %v632, %v803
      %805 = vmatmul.f32.gmra.mxu0 %v298
      %v806 = vpop.f32.mrf.mxu0
      %v807 = vadd.f32 %v637, %v806
      %808 = vmatmul.f32.gmra.mxu0 %v299
      %v809 = vpop.f32.mrf.mxu0
      %v810 = vadd.f32 %v642, %v809
      %811 = vmatmul.f32.gmra.mxu0 %v300
      %v812 = vpop.f32.mrf.mxu0
      %v813 = vadd.f32 %v647, %v812
      %814 = vmatmul.f32.gmra.mxu0 %v301
      %v815 = vpop.f32.mrf.mxu0
      %v816 = vadd.f32 %v652, %v815
      %817 = vmatmul.f32.gmra.mxu0 %v302
      %v818 = vpop.f32.mrf.mxu0
      %v819 = vadd.f32 %v657, %v818
      %820 = vmatmul.f32.gmra.mxu0 %v303
      %v821 = vpop.f32.mrf.mxu0
      %v822 = vadd.f32 %v662, %v821
      %823 = vmatmul.f32.gmra.mxu0 %v304
      %v824 = vpop.f32.mrf.mxu0
      %v825 = vadd.f32 %v667, %v824
      %826 = vmatmul.f32.gmra.mxu0 %v305
      %v827 = vpop.f32.mrf.mxu0
      %v828 = vadd.f32 %v672, %v827
      %829 = vmatmul.f32.gmra.mxu0 %v306
      %v830 = vpop.f32.mrf.mxu0
      %v831 = vadd.f32 %v677, %v830
      %832 = vmatmul.f32.gmra.mxu0 %v307
      %v833 = vpop.f32.mrf.mxu0
      %v834 = vadd.f32 %v682, %v833
      %835 = vmatmul.f32.gmra.mxu0 %v308
      %v836 = vpop.f32.mrf.mxu0
      %v837 = vadd.f32 %v687, %v836
      %838 = vmatmul.f32.gmra.mxu0 %v309
      %v839 = vpop.f32.mrf.mxu0
      %v840 = vadd.f32 %v692, %v839
      %841 = vmatmul.f32.gmra.mxu0 %v310
      %v842 = vpop.f32.mrf.mxu0
      %v843 = vadd.f32 %v697, %v842
      %844 = vdwg.mxu0
      %v845 = vtanh.pop %v798
      %v846 = vtanh.pop %v801
      %v847 = vtanh.pop %v804
      %v848 = vtanh.pop %v807
      %v849 = vtanh.pop %v810
      %v850 = vtanh.pop %v813
      %v851 = vtanh.pop %v816
      %v852 = vtanh.pop %v819
      %v853 = vtanh.pop %v822
      %v854 = vtanh.pop %v825
      %v855 = vtanh.pop %v828
      %v856 = vtanh.pop %v831
      %v857 = vtanh.pop %v834
      %v858 = vtanh.pop %v837
      %v859 = vtanh.pop %v840
      %v860 = vtanh.pop %v843
      %861 = vmatpush.msra.mxu0 %v860
      %862 = vmatpush.msra.mxu0 %v859
      %863 = vmatpush.msra.mxu0 %v858
      %864 = vmatpush.msra.mxu0 %v857
      %865 = vmatpush.msra.mxu0 %v856
      %866 = vmatpush.msra.mxu0 %v855
      %867 = vmatpush.msra.mxu0 %v854
      %868 = vmatpush.msra.mxu0 %v853
      %869 = vmatpush.msra.mxu0 %v852
      %870 = vmatpush.msra.mxu0 %v851
      %871 = vmatpush.msra.mxu0 %v850
      %872 = vmatpush.msra.mxu0 %v849
      %873 = vmatpush.msra.mxu0 %v848
      %874 = vmatpush.msra.mxu0 %v847
      %875 = vmatpush.msra.mxu0 %v846
      %876 = vmatpush.msra.mxu0 %v845
      %877 = vmatmul.f32.gmra.mxu0 %v295
      %v878 = vpop.f32.mrf.mxu0
      %v879 = vadd.f32 %v622, %v878
      %880 = vmatmul.f32.gmra.mxu0 %v296
      %v881 = vpop.f32.mrf.mxu0
      %v882 = vadd.f32 %v627, %v881
      %883 = vmatmul.f32.gmra.mxu0 %v297
      %v884 = vpop.f32.mrf.mxu0
      %v885 = vadd.f32 %v632, %v884
      %886 = vmatmul.f32.gmra.mxu0 %v298
      %v887 = vpop.f32.mrf.mxu0
      %v888 = vadd.f32 %v637, %v887
      %889 = vmatmul.f32.gmra.mxu0 %v299
      %v890 = vpop.f32.mrf.mxu0
      %v891 = vadd.f32 %v642, %v890
      %892 = vmatmul.f32.gmra.mxu0 %v300
      %v893 = vpop.f32.mrf.mxu0
      %v894 = vadd.f32 %v647, %v893
      %895 = vmatmul.f32.gmra.mxu0 %v301
      %v896 = vpop.f32.mrf.mxu0
      %v897 = vadd.f32 %v652, %v896
      %898 = vmatmul.f32.gmra.mxu0 %v302
      %v899 = vpop.f32.mrf.mxu0
      %v900 = vadd.f32 %v657, %v899
      %901 = vmatmul.f32.gmra.mxu0 %v303
      %v902 = vpop.f32.mrf.mxu0
      %v903 = vadd.f32 %v662, %v902
      %904 = vmatmul.f32.gmra.mxu0 %v304
      %v905 = vpop.f32.mrf.mxu0
      %v906 = vadd.f32 %v667, %v905
      %907 = vmatmul.f32.gmra.mxu0 %v305
      %v908 = vpop.f32.mrf.mxu0
      %v909 = vadd.f32 %v672, %v908
      %910 = vmatmul.f32.gmra.mxu0 %v306
      %v911 = vpop.f32.mrf.mxu0
      %v912 = vadd.f32 %v677, %v911
      %913 = vmatmul.f32.gmra.mxu0 %v307
      %v914 = vpop.f32.mrf.mxu0
      %v915 = vadd.f32 %v682, %v914
      %916 = vmatmul.f32.gmra.mxu0 %v308
      %v917 = vpop.f32.mrf.mxu0
      %v918 = vadd.f32 %v687, %v917
      %919 = vmatmul.f32.gmra.mxu0 %v309
      %v920 = vpop.f32.mrf.mxu0
      %v921 = vadd.f32 %v692, %v920
      %922 = vmatmul.f32.gmra.mxu0 %v310
      %v923 = vpop.f32.mrf.mxu0
      %v924 = vadd.f32 %v697, %v923
      %925 = vdwg.mxu0
      %v926 = vtanh.pop %v879
      %v927 = vtanh.pop %v882
      %v928 = vtanh.pop %v885
      %v929 = vtanh.pop %v888
      %v930 = vtanh.pop %v891
      %v931 = vtanh.pop %v894
      %v932 = vtanh.pop %v897
      %v933 = vtanh.pop %v900
      %v934 = vtanh.pop %v903
      %v935 = vtanh.pop %v906
      %v936 = vtanh.pop %v909
      %v937 = vtanh.pop %v912
      %v938 = vtanh.pop %v915
      %v939 = vtanh.pop %v918
      %v940 = vtanh.pop %v921
      %v941 = vtanh.pop %v924
      %943 = vset.pattern.permute.xlu0 0
      %944 = vperm.xlu0 %943, %v344
      %v945 = vpop.permute.xlu0 %944
      %v947 = vperm.slane %v945, 0
      %948 = vmatpush.msra.mxu0 %v941
      %949 = vmatpush.msra.mxu0 %v940
      %950 = vmatpush.msra.mxu0 %v939
      %951 = vmatpush.msra.mxu0 %v938
      %952 = vmatpush.msra.mxu0 %v937
      %953 = vmatpush.msra.mxu0 %v936
      %954 = vmatpush.msra.mxu0 %v935
      %955 = vmatpush.msra.mxu0 %v934
      %956 = vmatpush.msra.mxu0 %v933
      %957 = vmatpush.msra.mxu0 %v932
      %958 = vmatpush.msra.mxu0 %v931
      %959 = vmatpush.msra.mxu0 %v930
      %960 = vmatpush.msra.mxu0 %v929
      %961 = vmatpush.msra.mxu0 %v928
      %962 = vmatpush.msra.mxu0 %v927
      %963 = vmatpush.msra.mxu0 %v926
      %964 = vmatmul.f32.gmra.mxu0 %v311
      %v965 = vpop.f32.mrf.mxu0
      %v966 = vadd.f32 %v947, %v965
      %967 = vdwg.mxu0
      %968 = vst [vmem:[%s278] sm:$0x1] %v966
      %p969 = scmp.lt.s32.totalorder %s20, 2
      %s970 = scalar_select %p969, %s20, 2
      %s971 = scalar_lea.vmem %s7, %s970
      // Predicated region
      $region49: #{linear_net_forward.1} parent=47 // pred_check
        %p972 = pneg %p190
      $region50: #{linear_net_forward.1} parent=47 // pred_check_branch
        %974 = sbr.rel (%p972) target = $region52
      $region51: #{linear_net_forward.1} parent=47 // pred_region
        _
      $region52: #{linear_net_forward.1} parent=47 // pred_fallthru
        _
    $region48: #{linear_net_forward.1} parent=5 // pred_fallthru
      _
    %p975 = scmp.le.s32.totalorder 2, %s15
    // Predicated region
    $region53: #{linear_net_forward.1} parent=5 // pred_check
      %p976 = pneg %p975
    $region54: #{linear_net_forward.1} parent=5 // pred_check_branch
      %978 = sbr.rel (%p976) target = $region56
    $region55: #{linear_net_forward.1} parent=5 // pred_region
      %s979 = ssub.s32 %s15, 2
      // Predicated region
      $region57: #{linear_net_forward.1} parent=55 // pred_check
        %p980 = pneg %p196
      $region58: #{linear_net_forward.1} parent=55 // pred_check_branch
        %982 = sbr.rel (%p980) target = $region60
      $region59: #{linear_net_forward.1} parent=55 // pred_region
        %p983 = scmp.lt.s32.totalorder %s21, 2
        %s984 = scalar_select %p983, %s21, 2
        %s985 = scalar_lea.vmem %s7, %s984
      $region60: #{linear_net_forward.1} parent=55 // pred_fallthru
        _
    $region56: #{linear_net_forward.1} parent=5 // pred_fallthru
      _
  $region6: #{linear_net_forward.1} parent=0 // loop_footer
    %s19 = sadd.s32 1, %s15
  $region7: #{linear_net_forward.1} parent=0 // loop_footer_branch
    %14 = sbr.rel target = $region3
  $region8: #{linear_net_forward.1} parent=0 // loop_exit
    _

</llo_original>
